<compile_context>
chip_gen: v7x
topology: tpu7x:2x2x1
jax: 0.10.0
libtpu: 0.0.40
codegen_flags: <defaults>
</compile_context>

<pallas_src>
import functools

import jax
import jax.numpy as jnp
from jax.experimental import pallas as pl
from jax.experimental.pallas import tpu as pltpu


# ----------------------------------------------------------------------------
# Fused kernel: BN1 -> SiLU -> conv1(+BN2) -> SiLU -> conv2 -> +x -> strided pool
# All activations live as (C, Wb) slabs: Bt batch segments of width Lp packed
# along lanes, each segment = [left zeros | L data cols | right zeros].
# ----------------------------------------------------------------------------
def _encoder_block_kernel(x_ref, mask_ref, cvec_ref, w1_ref, w2_ref, wp_ref,
                          bp_ref, sel_ref, o_ref,
                          *, K, PL, KP, PPL, C, Wb, use_bf16):
    f32 = jnp.float32
    dot_dt = jnp.bfloat16 if use_bf16 else f32

    x = x_ref[...].astype(f32)                 # (C, Wb) packed activations
    m = mask_ref[...]                          # (1, Wb): 1.0 at data cols, 0.0 at padding

    s1 = cvec_ref[:, 0:1]                      # folded BN1 scale        (C, 1)
    t1 = cvec_ref[:, 1:2]                      # folded BN1 shift        (C, 1)
    b1 = cvec_ref[:, 2:3]                      # conv1 bias (BN2 folded) (C, 1)
    b2 = cvec_ref[:, 3:4]                      # conv2 bias              (C, 1)

    def shift_views(h, nk, left):
        # view_k[:, j] = h[:, j + k - left]; zero-filled at the slab edges (those
        # columns are always masked padding).  Stacked -> one MXU contraction.
        views = []
        for k in range(nk):
            d = k - left
            if d == 0:
                v = h
            elif d > 0:
                v = jnp.concatenate([h[:, d:], jnp.zeros((C, d), h.dtype)], axis=1)
            else:
                v = jnp.concatenate([jnp.zeros((C, -d), h.dtype), h[:, :Wb + d]], axis=1)
            views.append(v)
        return jnp.concatenate(views, axis=0)  # (nk*C, Wb)

    def conv_same(h, w_ref, b):
        xk = shift_views(h.astype(dot_dt), K, PL)
        w = w_ref[...].astype(dot_dt)
        return jnp.dot(w, xk, preferred_element_type=f32) + b

    def silu(h):
        return h * jax.nn.sigmoid(h)

    # BN1 -> SiLU; mask so the conv halo columns stay exact zeros.
    h = silu(x * s1 + t1) * m
    # conv1 (BN2 scale/shift already folded into w1/b1 on the host) -> SiLU.
    h = silu(conv_same(h, w1_ref, b1)) * m
    # Dropout(p=0.15) is identity in eval mode.
    h = conv_same(h, w2_ref, b2)
    # Residual (AlignBranches); mask so the pool halo columns are exact zeros.
    y = (h + x) * m

    # ---- pool: dense stride-1 conv (one dot) + exact 0/1 selection matmul ----
    xk = shift_views(y.astype(dot_dt), KP, PPL)
    z = jnp.dot(wp_ref[...].astype(dot_dt), xk, preferred_element_type=f32)   # (O, Wb)
    z = jnp.dot(z, sel_ref[...], preferred_element_type=f32)                  # (O, Bt*LO)
    o_ref[...] = (z + bp_ref[...]).astype(o_ref.dtype)


# ----------------------------------------------------------------------------
# Parameter folding (host glue): weight_norm + BatchNorm folding
# ----------------------------------------------------------------------------
def weight_norm(v, g):
    # effective weight = g * v / ||v||   (norm over (in, k) per output channel)
    norm = jnp.sqrt(jnp.sum(v * v, axis=(1, 2), keepdims=True))
    return g[:, None, None] * v / norm


def bn_fold(gamma, beta, mean, var, eps=1e-5):
    scale = gamma / jnp.sqrt(var + eps)
    shift = beta - mean * scale
    return scale, shift                        # (C,), (C,)


def v2_encoder_block_forward(x, params, *, kernel_size, ratio, use_bf16=False):
    B, C, L = x.shape
    K = kernel_size
    PL, PR = (K - 1) // 2, K // 2              # cc.get_padding(K), stride 1

    w1 = weight_norm(params["v1"], params["g1"])          # (C, C, K)
    w2 = weight_norm(params["v2"], params["g2"])          # (C, C, K)
    wp = weight_norm(params["vp"], params["gp"])          # (O, C, KP)
    O, _, KP = wp.shape

    if ratio != 1:
        stride = ratio
        ppad = KP - stride                                 # cc.get_padding(2*ratio, ratio)
    else:
        stride, ppad = 1, 0                                # 1-tap pool conv
    ppl, ppr = ppad // 2, ppad - ppad // 2
    LO = (L + ppad - KP) // stride + 1

    # Per-segment zero halo wide enough for both the "same" convs and the pool.
    PLs, PRs = max(PL, ppl), max(PR, ppr)
    Lp = L + PLs + PRs

    # Eval BatchNorm folding; fold BN2 into conv1 (exact).
    s1, t1 = bn_fold(params["bn1_g"], params["bn1_b"], params["bn1_m"], params["bn1_v"])
    s2, t2 = bn_fold(params["bn2_g"], params["bn2_b"], params["bn2_m"], params["bn2_v"])
    b1 = s2 * params["b1"] + t2
    b2 = params["b2"]

    # Flatten conv weights to (out, K*in) so each conv is one MXU dot; scale conv1
    # rows by BN2's folded scale.
    w1f = s2[:, None] * jnp.transpose(w1, (0, 2, 1)).reshape(C, K * C)
    w2f = jnp.transpose(w2, (0, 2, 1)).reshape(C, K * C)
    wpf = jnp.transpose(wp, (0, 2, 1)).reshape(O, KP * C)

    # Consolidated per-channel constants: one (C, 4) operand instead of 4 tiny DMAs.
    cvec = jnp.stack([s1, t1, b1, b2], axis=1).astype(jnp.float32)
    bp = params["bp"][:, None].astype(jnp.float32)

    # Split the batch into two "parallel" grid steps (v7x megacore) only when each
    # half remains lane-dense and (8,128)-aligned; otherwise one fully packed step
    # (best on v5e/v6e and at small shapes).
    if (B % 2 == 0 and ((B // 2) * Lp) % 128 == 0 and ((B // 2) * LO) % 128 == 0
            and (B // 2) * Lp >= 256):
        nblk = 2
    else:
        nblk = 1
    Bt = B // nblk
    Wb = Bt * Lp

    # Host-side layout plumbing: pack batch into lanes -> (C, B*Lp), zero halos
    # around every segment.
    xp = jnp.pad(jnp.transpose(x, (1, 0, 2)).astype(jnp.float32),
                 ((0, 0), (0, 0), (PLs, PRs))).reshape(C, B * Lp)

    # Data-column mask (identical for every grid block).
    col = jnp.arange(Wb) % Lp
    mask = ((col >= PLs) & (col < PLs + L)).astype(jnp.float32)[None, :]

    # Exact 0/1 selection matrix picking the strided pool outputs (per block).
    j = jnp.arange(Wb)[:, None]
    o = jnp.arange(Bt * LO)[None, :]
    tgt = (o // LO) * Lp + PLs + (o % LO) * stride
    sel = (j == tgt).astype(jnp.float32)                   # (Wb, Bt*LO)

    kern = functools.partial(_encoder_block_kernel, K=K, PL=PL, KP=KP, PPL=ppl,
                             C=C, Wb=Wb, use_bf16=use_bf16)

    const = lambda shape: pl.BlockSpec(shape, lambda i: (0, 0))
    out_packed = pl.pallas_call(
        kern,
        out_shape=jax.ShapeDtypeStruct((O, B * LO), jnp.float32),
        grid=(nblk,),
        in_specs=[
            pl.BlockSpec((C, Wb), lambda i: (0, i)),       # packed activations
            const((1, Wb)),                                # data-column mask
            const((C, 4)),                                 # s1 | t1 | b1 | b2
            const((C, K * C)),                             # conv1 weight (BN2 folded)
            const((C, K * C)),                             # conv2 weight
            const((O, KP * C)),                            # pool weight
            const((O, 1)),                                 # pool bias
            const((Wb, Bt * LO)),                          # strided-selection matrix
        ],
        out_specs=pl.BlockSpec((O, Bt * LO), lambda i: (0, i)),
        compiler_params=pltpu.CompilerParams(
            dimension_semantics=("parallel",)),
    )(xp, mask, cvec, w1f, w2f, wpf, bp, sel)

    # (O, B*LO) -> (B, O, LO)
    return jnp.transpose(out_packed.reshape(O, B, LO), (1, 0, 2))


# ----------------------------------------------------------------------------
# Pure-JAX reference for verification
# ----------------------------------------------------------------------------
def reference_forward(x, params, *, kernel_size, ratio):
    def conv1d(h, w, b, stride, pad):
        out = jax.lax.conv_general_dilated(
            h, w, (stride,), [pad], dimension_numbers=("NCH", "OIH", "NCH"))
        return out + b[None, :, None]

    def silu(h):
        return h * jax.nn.sigmoid(h)

    w1 = weight_norm(params["v1"], params["g1"])
    w2 = weight_norm(params["v2"], params["g2"])
    wp = weight_norm(params["vp"], params["gp"])
    s1, t1 = bn_fold(params["bn1_g"], params["bn1_b"], params["bn1_m"], params["bn1_v"])
    s2, t2 = bn_fold(params["bn2_g"], params["bn2_b"], params["bn2_m"], params["bn2_v"])

    K = kernel_size
    h = silu(x * s1[None, :, None] + t1[None, :, None])
    h = conv1d(h, w1, params["b1"], 1, ((K - 1) // 2, K // 2))
    h = silu(h * s2[None, :, None] + t2[None, :, None])
    h = conv1d(h, w2, params["b2"], 1, ((K - 1) // 2, K // 2))
    y = h + x
    if ratio != 1:
        p = 2 * ratio - ratio
        return conv1d(y, wp, params["bp"], ratio, (p // 2, p - p // 2))
    return conv1d(y, wp, params["bp"], 1, (0, 0))


# ----------------------------------------------------------------------------
def make_params(key, in_c, out_c, kernel_size, ratio):
    ks = jax.random.split(key, 18)
    kp = 2 * ratio if ratio != 1 else 1                    # pool kernel as in the module
    return dict(
        # BatchNorm1d(in_c)
        bn1_g=jax.random.normal(ks[0], (in_c,)) * 0.1 + 1.0,
        bn1_b=jax.random.normal(ks[1], (in_c,)) * 0.1,
        bn1_m=jax.random.normal(ks[2], (in_c,)) * 0.1,
        bn1_v=jnp.abs(jax.random.normal(ks[3], (in_c,))) * 0.1 + 0.5,
        # weight-normed Conv1d(in_c, in_c, kernel_size)
        v1=jax.random.normal(ks[4], (in_c, in_c, kernel_size)) * 0.3,
        g1=jnp.abs(jax.random.normal(ks[5], (in_c,))) + 0.5,
        b1=jax.random.normal(ks[6], (in_c,)) * 0.1,
        # BatchNorm1d(in_c)
        bn2_g=jax.random.normal(ks[7], (in_c,)) * 0.1 + 1.0,
        bn2_b=jax.random.normal(ks[8], (in_c,)) * 0.1,
        bn2_m=jax.random.normal(ks[9], (in_c,)) * 0.1,
        bn2_v=jnp.abs(jax.random.normal(ks[10], (in_c,))) * 0.1 + 0.5,
        # weight-normed Conv1d(in_c, in_c, kernel_size)
        v2=jax.random.normal(ks[11], (in_c, in_c, kernel_size)) * 0.3,
        g2=jnp.abs(jax.random.normal(ks[12], (in_c,))) + 0.5,
        b2=jax.random.normal(ks[13], (in_c,)) * 0.1,
        # weight-normed pool Conv1d(in_c, out_c, kp, stride=ratio)
        vp=jax.random.normal(ks[14], (out_c, in_c, kp)) * 0.3,
        gp=jnp.abs(jax.random.normal(ks[15], (out_c,))) + 0.5,
        bp=jax.random.normal(ks[16], (out_c,)) * 0.1,
    )


if __name__ == "__main__":
    key = jax.random.PRNGKey(0)
    kx1, kp1, kx2, kp2 = jax.random.split(key, 4)

    # module config: in_c=8, tot_cond_channels=0, out_c=16, kernel_size=3
    cases = [
        # (B, in_c, out_c, L, kernel_size, ratio, x-key, param-key)
        (2, 8, 16, 32, 3, 2, kx1, kp1),   # strided pool (kernel=4, stride=2)
        (2, 8, 16, 32, 3, 1, kx2, kp2),   # ratio == 1 path (1-tap pool, stride=1)
    ]
    for (B, IN_C, OUT_C, L, KS, RATIO, kx, kp) in cases:
        x = jax.random.normal(kx, (B, IN_C, L), jnp.float32)
        params = make_params(kp, IN_C, OUT_C, KS, RATIO)

        out = jax.block_until_ready(
            v2_encoder_block_forward(x, params, kernel_size=KS, ratio=RATIO))
        ref = jax.block_until_ready(
            reference_forward(x, params, kernel_size=KS, ratio=RATIO))

        exp_lo = L // RATIO if RATIO != 1 else L
        assert out.shape == (B, OUT_C, exp_lo), out.shape
        assert jnp.allclose(out, ref, atol=1e-4, rtol=1e-4), (
            RATIO, float(jnp.max(jnp.abs(out - ref))))

    print("KERNEL_OK")
</pallas_src>

<mosaic_0001>
module attributes {stable_mosaic.version = 11 : i64} {
  func.func @_encoder_block_kernel(%arg0: i32, %arg1: memref<8x68xf32, #tpu.memory_space<vmem>>, %arg2: memref<1x68xf32, #tpu.memory_space<vmem>>, %arg3: memref<8x4xf32, #tpu.memory_space<vmem>>, %arg4: memref<8x24xf32, #tpu.memory_space<vmem>>, %arg5: memref<8x24xf32, #tpu.memory_space<vmem>>, %arg6: memref<16x32xf32, #tpu.memory_space<vmem>>, %arg7: memref<16x1xf32, #tpu.memory_space<vmem>>, %arg8: memref<68x32xf32, #tpu.memory_space<vmem>>, %arg9: memref<16x32xf32, #tpu.memory_space<vmem>>) attributes {dimension_semantics = [#tpu.dimension_semantics<parallel>], iteration_bounds = array<i64: 1>, scalar_prefetch = 0 : i64, scratch_operands = 0 : i64, tpu.core_type = #tpu.core_type<tc>, window_params = [{transform_indices = @transform_0, window_bounds = array<i64: 8, 68>}, {pipeline_mode = #tpu.pipeline_mode<synchronous>, transform_indices = @transform_1, window_bounds = array<i64: 1, 68>}, {pipeline_mode = #tpu.pipeline_mode<synchronous>, transform_indices = @transform_2, window_bounds = array<i64: 8, 4>}, {pipeline_mode = #tpu.pipeline_mode<synchronous>, transform_indices = @transform_3, window_bounds = array<i64: 8, 24>}, {pipeline_mode = #tpu.pipeline_mode<synchronous>, transform_indices = @transform_4, window_bounds = array<i64: 8, 24>}, {pipeline_mode = #tpu.pipeline_mode<synchronous>, transform_indices = @transform_5, window_bounds = array<i64: 16, 32>}, {pipeline_mode = #tpu.pipeline_mode<synchronous>, transform_indices = @transform_6, window_bounds = array<i64: 16, 1>}, {pipeline_mode = #tpu.pipeline_mode<synchronous>, transform_indices = @transform_7, window_bounds = array<i64: 68, 32>}, {transform_indices = @transform_8, window_bounds = array<i64: 16, 32>}]} {
    %c0 = arith.constant 0 : index
    %c0_0 = arith.constant 0 : index
    %0 = vector.load %arg1[%c0, %c0_0] : memref<8x68xf32, #tpu.memory_space<vmem>>, vector<8x68xf32>
    %c0_1 = arith.constant 0 : index
    %c0_2 = arith.constant 0 : index
    %1 = vector.load %arg2[%c0_1, %c0_2] : memref<1x68xf32, #tpu.memory_space<vmem>>, vector<1x68xf32>
    %c0_3 = arith.constant 0 : index
    %c0_4 = arith.constant 0 : index
    %2 = vector.load %arg3[%c0_3, %c0_4] : memref<8x4xf32, #tpu.memory_space<vmem>>, vector<8x1xf32>
    %c0_5 = arith.constant 0 : index
    %c1 = arith.constant 1 : index
    %3 = vector.load %arg3[%c0_5, %c1] : memref<8x4xf32, #tpu.memory_space<vmem>>, vector<8x1xf32>
    %c0_6 = arith.constant 0 : index
    %c2 = arith.constant 2 : index
    %4 = vector.load %arg3[%c0_6, %c2] : memref<8x4xf32, #tpu.memory_space<vmem>>, vector<8x1xf32>
    %c0_7 = arith.constant 0 : index
    %c3 = arith.constant 3 : index
    %5 = vector.load %arg3[%c0_7, %c3] : memref<8x4xf32, #tpu.memory_space<vmem>>, vector<8x1xf32>
    %6 = vector.broadcast %2 : vector<8x1xf32> to vector<8x68xf32>
    %7 = arith.mulf %0, %6 : vector<8x68xf32>
    %8 = vector.broadcast %3 : vector<8x1xf32> to vector<8x68xf32>
    %9 = arith.addf %7, %8 : vector<8x68xf32>
    %10 = arith.negf %9 : vector<8x68xf32>
    %11 = math.exp %10 : vector<8x68xf32>
    %cst = arith.constant 1.000000e+00 : f32
    %12 = vector.broadcast %cst : f32 to vector<8x68xf32>
    %13 = arith.addf %12, %11 : vector<8x68xf32>
    %14 = arith.divf %12, %13 : vector<8x68xf32>
    %15 = arith.mulf %9, %14 : vector<8x68xf32>
    %16 = vector.broadcast %1 : vector<1x68xf32> to vector<8x68xf32>
    %17 = arith.mulf %15, %16 : vector<8x68xf32>
    %cst_8 = arith.constant 0.000000e+00 : f32
    %18 = vector.broadcast %cst_8 : f32 to vector<8x1xf32>
    %19 = vector.extract_strided_slice %17 {offsets = [0, 0], sizes = [8, 67], strides = [1, 1]} : vector<8x68xf32> to vector<8x67xf32>
    %20 = tpu.concatenate %18, %19 in 1 : vector<8x1xf32>, vector<8x67xf32> -> vector<8x68xf32>
    %21 = vector.extract_strided_slice %17 {offsets = [0, 1], sizes = [8, 67], strides = [1, 1]} : vector<8x68xf32> to vector<8x67xf32>
    %cst_9 = arith.constant 0.000000e+00 : f32
    %22 = vector.broadcast %cst_9 : f32 to vector<8x1xf32>
    %23 = tpu.concatenate %21, %22 in 1 : vector<8x67xf32>, vector<8x1xf32> -> vector<8x68xf32>
    %24 = tpu.concatenate %20, %17, %23 in 0 : vector<8x68xf32>, vector<8x68xf32>, vector<8x68xf32> -> vector<24x68xf32>
    %c0_10 = arith.constant 0 : index
    %c0_11 = arith.constant 0 : index
    %25 = vector.load %arg4[%c0_10, %c0_11] : memref<8x24xf32, #tpu.memory_space<vmem>>, vector<8x24xf32>
    %cst_12 = arith.constant dense<0.000000e+00> : vector<8x68xf32>
    %26 = tpu.matmul %25, %24, %cst_12 {dimension_numbers = #tpu.dot_dimension_numbers<[1], [0], [0], [1], [0, 0, 1, 1], [], []>} : vector<8x24xf32>, vector<24x68xf32>, vector<8x68xf32> -> vector<8x68xf32>
    %27 = vector.broadcast %4 : vector<8x1xf32> to vector<8x68xf32>
    %28 = arith.addf %26, %27 : vector<8x68xf32>
    %29 = arith.negf %28 : vector<8x68xf32>
    %30 = math.exp %29 : vector<8x68xf32>
    %cst_13 = arith.constant 1.000000e+00 : f32
    %31 = vector.broadcast %cst_13 : f32 to vector<8x68xf32>
    %32 = arith.addf %31, %30 : vector<8x68xf32>
    %33 = arith.divf %31, %32 : vector<8x68xf32>
    %34 = arith.mulf %28, %33 : vector<8x68xf32>
    %35 = vector.broadcast %1 : vector<1x68xf32> to vector<8x68xf32>
    %36 = arith.mulf %34, %35 : vector<8x68xf32>
    %cst_14 = arith.constant 0.000000e+00 : f32
    %37 = vector.broadcast %cst_14 : f32 to vector<8x1xf32>
    %38 = vector.extract_strided_slice %36 {offsets = [0, 0], sizes = [8, 67], strides = [1, 1]} : vector<8x68xf32> to vector<8x67xf32>
    %39 = tpu.concatenate %37, %38 in 1 : vector<8x1xf32>, vector<8x67xf32> -> vector<8x68xf32>
    %40 = vector.extract_strided_slice %36 {offsets = [0, 1], sizes = [8, 67], strides = [1, 1]} : vector<8x68xf32> to vector<8x67xf32>
    %cst_15 = arith.constant 0.000000e+00 : f32
    %41 = vector.broadcast %cst_15 : f32 to vector<8x1xf32>
    %42 = tpu.concatenate %40, %41 in 1 : vector<8x67xf32>, vector<8x1xf32> -> vector<8x68xf32>
    %43 = tpu.concatenate %39, %36, %42 in 0 : vector<8x68xf32>, vector<8x68xf32>, vector<8x68xf32> -> vector<24x68xf32>
    %c0_16 = arith.constant 0 : index
    %c0_17 = arith.constant 0 : index
    %44 = vector.load %arg5[%c0_16, %c0_17] : memref<8x24xf32, #tpu.memory_space<vmem>>, vector<8x24xf32>
    %cst_18 = arith.constant dense<0.000000e+00> : vector<8x68xf32>
    %45 = tpu.matmul %44, %43, %cst_18 {dimension_numbers = #tpu.dot_dimension_numbers<[1], [0], [0], [1], [0, 0, 1, 1], [], []>} : vector<8x24xf32>, vector<24x68xf32>, vector<8x68xf32> -> vector<8x68xf32>
    %46 = vector.broadcast %5 : vector<8x1xf32> to vector<8x68xf32>
    %47 = arith.addf %45, %46 : vector<8x68xf32>
    %48 = arith.addf %47, %0 : vector<8x68xf32>
    %49 = vector.broadcast %1 : vector<1x68xf32> to vector<8x68xf32>
    %50 = arith.mulf %48, %49 : vector<8x68xf32>
    %cst_19 = arith.constant 0.000000e+00 : f32
    %51 = vector.broadcast %cst_19 : f32 to vector<8x1xf32>
    %52 = vector.extract_strided_slice %50 {offsets = [0, 0], sizes = [8, 67], strides = [1, 1]} : vector<8x68xf32> to vector<8x67xf32>
    %53 = tpu.concatenate %51, %52 in 1 : vector<8x1xf32>, vector<8x67xf32> -> vector<8x68xf32>
    %54 = vector.extract_strided_slice %50 {offsets = [0, 1], sizes = [8, 67], strides = [1, 1]} : vector<8x68xf32> to vector<8x67xf32>
    %cst_20 = arith.constant 0.000000e+00 : f32
    %55 = vector.broadcast %cst_20 : f32 to vector<8x1xf32>
    %56 = tpu.concatenate %54, %55 in 1 : vector<8x67xf32>, vector<8x1xf32> -> vector<8x68xf32>
    %57 = vector.extract_strided_slice %50 {offsets = [0, 2], sizes = [8, 66], strides = [1, 1]} : vector<8x68xf32> to vector<8x66xf32>
    %cst_21 = arith.constant 0.000000e+00 : f32
    %58 = vector.broadcast %cst_21 : f32 to vector<8x2xf32>
    %59 = tpu.concatenate %57, %58 in 1 : vector<8x66xf32>, vector<8x2xf32> -> vector<8x68xf32>
    %60 = tpu.concatenate %53, %50, %56, %59 in 0 : vector<8x68xf32>, vector<8x68xf32>, vector<8x68xf32>, vector<8x68xf32> -> vector<32x68xf32>
    %c0_22 = arith.constant 0 : index
    %c0_23 = arith.constant 0 : index
    %61 = vector.load %arg6[%c0_22, %c0_23] : memref<16x32xf32, #tpu.memory_space<vmem>>, vector<16x32xf32>
    %cst_24 = arith.constant dense<0.000000e+00> : vector<16x68xf32>
    %62 = tpu.matmul %61, %60, %cst_24 {dimension_numbers = #tpu.dot_dimension_numbers<[1], [0], [0], [1], [0, 0, 1, 1], [], []>} : vector<16x32xf32>, vector<32x68xf32>, vector<16x68xf32> -> vector<16x68xf32>
    %c0_25 = arith.constant 0 : index
    %c0_26 = arith.constant 0 : index
    %63 = vector.load %arg8[%c0_25, %c0_26] : memref<68x32xf32, #tpu.memory_space<vmem>>, vector<68x32xf32>
    %cst_27 = arith.constant dense<0.000000e+00> : vector<16x32xf32>
    %64 = tpu.matmul %62, %63, %cst_27 {dimension_numbers = #tpu.dot_dimension_numbers<[1], [0], [0], [1], [0, 0, 1, 1], [], []>} : vector<16x68xf32>, vector<68x32xf32>, vector<16x32xf32> -> vector<16x32xf32>
    %c0_28 = arith.constant 0 : index
    %c0_29 = arith.constant 0 : index
    %65 = vector.load %arg7[%c0_28, %c0_29] : memref<16x1xf32, #tpu.memory_space<vmem>>, vector<16x1xf32>
    %66 = vector.broadcast %65 : vector<16x1xf32> to vector<16x32xf32>
    %67 = arith.addf %64, %66 : vector<16x32xf32>
    %c0_30 = arith.constant 0 : index
    %c0_31 = arith.constant 0 : index
    %68 = vector.load %arg9[%c0_30, %c0_31] : memref<16x32xf32, #tpu.memory_space<vmem>>, vector<16x32xf32>
    tpu.vector_store %arg9[%c0_30, %c0_31], %67 {strides = array<i32>} : memref<16x32xf32, #tpu.memory_space<vmem>>, vector<16x32xf32>,
    return
  }
  func.func @transform_0(%arg0: i32) -> (i32, i32) {
    %c0_i32 = arith.constant 0 : i32
    %c0_i32_0 = arith.constant 0 : i32
    return %c0_i32, %arg0 : i32, i32
  }
  func.func @transform_1(%arg0: i32) -> (i32, i32) {
    %c0_i32 = arith.constant 0 : i32
    %c0_i32_0 = arith.constant 0 : i32
    %c0_i32_1 = arith.constant 0 : i32
    return %c0_i32, %c0_i32_0 : i32, i32
  }
  func.func @transform_2(%arg0: i32) -> (i32, i32) {
    %c0_i32 = arith.constant 0 : i32
    %c0_i32_0 = arith.constant 0 : i32
    %c0_i32_1 = arith.constant 0 : i32
    return %c0_i32, %c0_i32_0 : i32, i32
  }
  func.func @transform_3(%arg0: i32) -> (i32, i32) {
    %c0_i32 = arith.constant 0 : i32
    %c0_i32_0 = arith.constant 0 : i32
    %c0_i32_1 = arith.constant 0 : i32
    return %c0_i32, %c0_i32_0 : i32, i32
  }
  func.func @transform_4(%arg0: i32) -> (i32, i32) {
    %c0_i32 = arith.constant 0 : i32
    %c0_i32_0 = arith.constant 0 : i32
    %c0_i32_1 = arith.constant 0 : i32
    return %c0_i32, %c0_i32_0 : i32, i32
  }
  func.func @transform_5(%arg0: i32) -> (i32, i32) {
    %c0_i32 = arith.constant 0 : i32
    %c0_i32_0 = arith.constant 0 : i32
    %c0_i32_1 = arith.constant 0 : i32
    return %c0_i32, %c0_i32_0 : i32, i32
  }
  func.func @transform_6(%arg0: i32) -> (i32, i32) {
    %c0_i32 = arith.constant 0 : i32
    %c0_i32_0 = arith.constant 0 : i32
    %c0_i32_1 = arith.constant 0 : i32
    return %c0_i32, %c0_i32_0 : i32, i32
  }
  func.func @transform_7(%arg0: i32) -> (i32, i32) {
    %c0_i32 = arith.constant 0 : i32
    %c0_i32_0 = arith.constant 0 : i32
    %c0_i32_1 = arith.constant 0 : i32
    return %c0_i32, %c0_i32_0 : i32, i32
  }
  func.func @transform_8(%arg0: i32) -> (i32, i32) {
    %c0_i32 = arith.constant 0 : i32
    %c0_i32_0 = arith.constant 0 : i32
    return %c0_i32, %arg0 : i32, i32
  }
}

</mosaic_0001>

<llo_original>
// kernel: tpu_custom_call.1
$region0: #{tpu_custom_call.1}
  #allocation0 [shape = 'u32[]', space=smem, size = 0x4, offset = 0x4, fixed_abs, tag = 'smem constant byte address 0x4 - core index']
  #allocation1 [shape = 'u32[144,128]{1,0:T(1,128)}', space=vmem, size = 0x12000, scoped, tag = 'internal scratch']
  %s0 = inlined_call_operand.vmem [shape: f32[8,68], index: 0, kind: input, shape index: {}]
  %s1 = inlined_call_operand.vmem [shape: f32[1,68], index: 1, kind: input, shape index: {}]
  %s2 = inlined_call_operand.vmem [shape: f32[8,4], index: 2, kind: input, shape index: {}]
  %s3 = inlined_call_operand.vmem [shape: f32[8,24], index: 3, kind: input, shape index: {}]
  %s4 = inlined_call_operand.vmem [shape: f32[8,24], index: 4, kind: input, shape index: {}]
  %s5 = inlined_call_operand.vmem [shape: f32[16,32], index: 5, kind: input, shape index: {}]
  %s6 = inlined_call_operand.vmem [shape: f32[16,1], index: 6, kind: input, shape index: {}]
  %s7 = inlined_call_operand.vmem [shape: f32[68,32], index: 7, kind: input, shape index: {}]
  %s8 = inlined_call_operand.hbm [shape: f32[16,32], index: 8, kind: output, shape index: {}]
  %s9 = sld [smem:[#allocation0]]
  $region42: #{tpu_custom_call.1} parent=0
    _
  %s11 = ssub.s32 1, %s9
  %s12 = scalar_select 0, %s11, %s9
  $region1: #{tpu_custom_call.1} parent=0
    #allocation2 [shape = 'u8[8192]{0}', space=vmem, size = 0x2000, scoped, tag = 'output window, operand 0, single buffered']
    #allocation3 [shape = 's32[1]{0}', space=sflag, size = 0x4, scoped, tag = 'scoped memory for tpu_custom_call.1']
    %13 = vsyncpa [#allocation3], 0
    // Predicated region
    $region2: #{tpu_custom_call.1} parent=1 // pred_check
      _
    $region3: #{tpu_custom_call.1} parent=1 // pred_check_branch
      %15 = sbr.rel (0) target = $region5
    $region4: #{tpu_custom_call.1} parent=1 // pred_region
      _
    $region5: #{tpu_custom_call.1} parent=1 // pred_fallthru
      _
    // Predicated region
    $region6: #{tpu_custom_call.1} parent=1 // pred_check
      _
    $region7: #{tpu_custom_call.1} parent=1 // pred_check_branch
      %17 = sbr.rel (0) target = $region9
    $region8: #{tpu_custom_call.1} parent=1 // pred_region
      _
    $region9: #{tpu_custom_call.1} parent=1 // pred_fallthru
      _
    // Predicated region
    $region10: #{tpu_custom_call.1} parent=1 // pred_check
      _
    $region11: #{tpu_custom_call.1} parent=1 // pred_check_branch
      %19 = sbr.rel (0) target = $region13
    $region12: #{tpu_custom_call.1} parent=1 // pred_region
      _
    $region13: #{tpu_custom_call.1} parent=1 // pred_fallthru
      _
    // Predicated region
    $region14: #{tpu_custom_call.1} parent=1 // pred_check
      _
    $region15: #{tpu_custom_call.1} parent=1 // pred_check_branch
      %21 = sbr.rel (0) target = $region17
    $region16: #{tpu_custom_call.1} parent=1 // pred_region
      _
    $region17: #{tpu_custom_call.1} parent=1 // pred_fallthru
      _
    // Predicated region
    $region18: #{tpu_custom_call.1} parent=1 // pred_check
      _
    $region19: #{tpu_custom_call.1} parent=1 // pred_check_branch
      %23 = sbr.rel (0) target = $region21
    $region20: #{tpu_custom_call.1} parent=1 // pred_region
      _
    $region21: #{tpu_custom_call.1} parent=1 // pred_fallthru
      _
    // Predicated region
    $region22: #{tpu_custom_call.1} parent=1 // pred_check
      _
    $region23: #{tpu_custom_call.1} parent=1 // pred_check_branch
      %25 = sbr.rel (0) target = $region25
    $region24: #{tpu_custom_call.1} parent=1 // pred_region
      _
    $region25: #{tpu_custom_call.1} parent=1 // pred_fallthru
      _
    // Predicated region
    $region26: #{tpu_custom_call.1} parent=1 // pred_check
      _
    $region27: #{tpu_custom_call.1} parent=1 // pred_check_branch
      %27 = sbr.rel (0) target = $region29
    $region28: #{tpu_custom_call.1} parent=1 // pred_region
      _
    $region29: #{tpu_custom_call.1} parent=1 // pred_fallthru
      _
    // Predicated region
    $region30: #{tpu_custom_call.1} parent=1 // pred_check
      _
    $region31: #{tpu_custom_call.1} parent=1 // pred_check_branch
      %29 = sbr.rel (0) target = $region33
    $region32: #{tpu_custom_call.1} parent=1 // pred_region
      _
    $region33: #{tpu_custom_call.1} parent=1 // pred_fallthru
      _
    %v30 = vld [vmem:[%s0] sm:$0xff]
    %v31 = vld [vmem:[%s1] sm:$0x1]
    %v32 = vld [vmem:[%s2] sm:$0xff]
    %34 = vset.pattern.permute.xlu0 0
    %35 = vperm.xlu0 %34, %v32
    %v36 = vpop.permute.xlu0 %35
    %v38 = vmul.f32 %v30, %v36
    %39 = vset.pattern.permute.xlu0 1
    %40 = vperm.xlu0 %39, %v32
    %v41 = vpop.permute.xlu0 %40
    %v43 = vadd.f32 %v38, %v41
    %v44 = vxor.u32 %v43, 2147483648
    %v45 = vmul.f32 %v44, 1.442695
    %v46 = vpow.pop %v45
    %v47 = vadd.f32 %v46, 1.0
    %v48 = vrcp.pop %v47
    %v49 = vmul.f32 1.0, %v48
    %v50 = vmul.f32 %v43, %v49
    %v52 = vlaneseq
    %v53 = vshrl.u32 %v52, 7
    %v54 = vsub.s32 0, %v53
    %v55 = vrot.slane %v31, %v54
    %v57 = vmul.f32 %v50, %v55
    %59 = vrot.lane.b32.xlu0 %v57, 1
    %v60 = vpop.permute.xlu0 %59
    %vm62 = vcmask 7168
    %v63 = vsel %vm62, 0.0, %v60
    %64 = vrot.lane.b32.xlu0 %v57, 127
    %v65 = vpop.permute.xlu0 %64
    %vm67 = vcmask 547840
    %v68 = vsel %vm67, %v65, 0.0
    %v69 = vld [vmem:[%s3] sm:$0xff]
    %70 = vset.pattern.permute.xlu0 2
    %71 = vperm.xlu0 %70, %v32
    %v72 = vpop.permute.xlu0 %71
    %vm74 = vcmask 195584
    %v76 = vsel %vm74, %v69, 0
    %78 = vmatprep.subr.mxu0 0.0
    %79 = vmatpush1.msra.mxu0 %v63
    %80 = vmatprep.subr.mxu0 0.0
    %81 = vmatpush1.msra.mxu0 %v57
    %82 = vmatprep.subr.mxu0 0.0
    %83 = vmatpush1.msra.mxu0 %v68
    %84 = vmatprep.subr.mxu0 0.0
    %85 = vmatpush1.msra.mxu0 0.0
    %86 = vmatprep.subr.mxu0 0.0
    %87 = vmatpush1.msra.mxu0 0.0
    %88 = vmatprep.subr.mxu0 0.0
    %89 = vmatpush1.msra.mxu0 0.0
    %90 = vmatprep.subr.mxu0 0.0
    %91 = vmatpush1.msra.mxu0 0.0
    %92 = vmatprep.subr.mxu0 0.0
    %93 = vmatpush1.msra.mxu0 0.0
    %94 = vmatprep.subr.mxu0 0.0
    %95 = vmatpush1.msra.mxu0 0.0
    %96 = vmatprep.subr.mxu0 0.0
    %97 = vmatpush1.msra.mxu0 0.0
    %98 = vmatprep.subr.mxu0 0.0
    %99 = vmatpush1.msra.mxu0 0.0
    %100 = vmatprep.subr.mxu0 0.0
    %101 = vmatpush1.msra.mxu0 0.0
    %102 = vmatprep.subr.mxu0 0.0
    %103 = vmatpush1.msra.mxu0 0.0
    %104 = vmatprep.subr.mxu0 0.0
    %105 = vmatpush1.msra.mxu0 0.0
    %106 = vmatprep.subr.mxu0 0.0
    %107 = vmatpush1.msra.mxu0 0.0
    %108 = vmatprep.subr.mxu0 0.0
    %109 = vmatpush1.msra.mxu0 0.0
    %110 = vmatprep.subr.mxu0 0.0
    %111 = vmatpush1.msra.mxu0 0.0
    %112 = vmatprep.subr.mxu0 0.0
    %113 = vmatpush1.msra.mxu0 0.0
    %114 = vmatprep.subr.mxu0 0.0
    %115 = vmatpush1.msra.mxu0 0.0
    %116 = vmatprep.subr.mxu0 0.0
    %117 = vmatpush1.msra.mxu0 0.0
    %118 = vmatprep.subr.mxu0 0.0
    %119 = vmatpush1.msra.mxu0 0.0
    %120 = vmatprep.subr.mxu0 0.0
    %121 = vmatpush1.msra.mxu0 0.0
    %122 = vmatprep.subr.mxu0 0.0
    %123 = vmatpush1.msra.mxu0 0.0
    %124 = vmatprep.subr.mxu0 0.0
    %125 = vmatpush1.msra.mxu0 0.0
    %126 = vmatprep.subr.mxu0 0.0
    %127 = vmatpush1.msra.mxu0 0.0
    %128 = vmatprep.subr.mxu0 0.0
    %129 = vmatpush1.msra.mxu0 0.0
    %130 = vmatprep.subr.mxu0 0.0
    %131 = vmatpush1.msra.mxu0 0.0
    %132 = vmatprep.subr.mxu0 0.0
    %133 = vmatpush1.msra.mxu0 0.0
    %134 = vmatprep.subr.mxu0 0.0
    %135 = vmatpush1.msra.mxu0 0.0
    %136 = vmatprep.subr.mxu0 0.0
    %137 = vmatpush1.msra.mxu0 0.0
    %138 = vmatprep.subr.mxu0 0.0
    %139 = vmatpush1.msra.mxu0 0.0
    %140 = vmatprep.subr.mxu0 0.0
    %141 = vmatpush1.msra.mxu0 0.0
    %142 = vmatprep.mubr.f32.mxu0 0.0
    %143 = vmatmul.mubr.f32.gmra.mrb[0].mxu0 %v76
    %v144 = vpop.f32.mrb[0].mxu0
    %v145 = vadd.f32 %v72, %v144
    %v146 = vpop.f32.mrb[0].mxu0
    %147 = vdwg.mxu0
    %v148 = vxor.u32 %v145, 2147483648
    %v149 = vmul.f32 %v148, 1.442695
    %v150 = vpow.pop %v149
    %v151 = vadd.f32 %v150, 1.0
    %v152 = vrcp.pop %v151
    %v153 = vmul.f32 1.0, %v152
    %v154 = vmul.f32 %v145, %v153
    %v155 = vmul.f32 %v154, %v55
    %157 = vrot.lane.b32.xlu0 %v155, 1
    %v158 = vpop.permute.xlu0 %157
    %v160 = vsel %vm62, 0.0, %v158
    %161 = vrot.lane.b32.xlu0 %v155, 127
    %v162 = vpop.permute.xlu0 %161
    %v164 = vsel %vm67, %v162, 0.0
    %v165 = vld [vmem:[%s4] sm:$0xff]
    %166 = vset.pattern.permute.xlu0 3
    %167 = vperm.xlu0 %166, %v32
    %v168 = vpop.permute.xlu0 %167
    %v171 = vsel %vm74, %v165, 0
    %173 = vmatprep.subr.mxu0 0.0
    %174 = vmatpush1.msra.mxu0 %v160
    %175 = vmatprep.subr.mxu0 0.0
    %176 = vmatpush1.msra.mxu0 %v155
    %177 = vmatprep.subr.mxu0 0.0
    %178 = vmatpush1.msra.mxu0 %v164
    %179 = vmatprep.subr.mxu0 0.0
    %180 = vmatpush1.msra.mxu0 0.0
    %181 = vmatprep.subr.mxu0 0.0
    %182 = vmatpush1.msra.mxu0 0.0
    %183 = vmatprep.subr.mxu0 0.0
    %184 = vmatpush1.msra.mxu0 0.0
    %185 = vmatprep.subr.mxu0 0.0
    %186 = vmatpush1.msra.mxu0 0.0
    %187 = vmatprep.subr.mxu0 0.0
    %188 = vmatpush1.msra.mxu0 0.0
    %189 = vmatprep.subr.mxu0 0.0
    %190 = vmatpush1.msra.mxu0 0.0
    %191 = vmatprep.subr.mxu0 0.0
    %192 = vmatpush1.msra.mxu0 0.0
    %193 = vmatprep.subr.mxu0 0.0
    %194 = vmatpush1.msra.mxu0 0.0
    %195 = vmatprep.subr.mxu0 0.0
    %196 = vmatpush1.msra.mxu0 0.0
    %197 = vmatprep.subr.mxu0 0.0
    %198 = vmatpush1.msra.mxu0 0.0
    %199 = vmatprep.subr.mxu0 0.0
    %200 = vmatpush1.msra.mxu0 0.0
    %201 = vmatprep.subr.mxu0 0.0
    %202 = vmatpush1.msra.mxu0 0.0
    %203 = vmatprep.subr.mxu0 0.0
    %204 = vmatpush1.msra.mxu0 0.0
    %205 = vmatprep.subr.mxu0 0.0
    %206 = vmatpush1.msra.mxu0 0.0
    %207 = vmatprep.subr.mxu0 0.0
    %208 = vmatpush1.msra.mxu0 0.0
    %209 = vmatprep.subr.mxu0 0.0
    %210 = vmatpush1.msra.mxu0 0.0
    %211 = vmatprep.subr.mxu0 0.0
    %212 = vmatpush1.msra.mxu0 0.0
    %213 = vmatprep.subr.mxu0 0.0
    %214 = vmatpush1.msra.mxu0 0.0
    %215 = vmatprep.subr.mxu0 0.0
    %216 = vmatpush1.msra.mxu0 0.0
    %217 = vmatprep.subr.mxu0 0.0
    %218 = vmatpush1.msra.mxu0 0.0
    %219 = vmatprep.subr.mxu0 0.0
    %220 = vmatpush1.msra.mxu0 0.0
    %221 = vmatprep.subr.mxu0 0.0
    %222 = vmatpush1.msra.mxu0 0.0
    %223 = vmatprep.subr.mxu0 0.0
    %224 = vmatpush1.msra.mxu0 0.0
    %225 = vmatprep.subr.mxu0 0.0
    %226 = vmatpush1.msra.mxu0 0.0
    %227 = vmatprep.subr.mxu0 0.0
    %228 = vmatpush1.msra.mxu0 0.0
    %229 = vmatprep.subr.mxu0 0.0
    %230 = vmatpush1.msra.mxu0 0.0
    %231 = vmatprep.subr.mxu0 0.0
    %232 = vmatpush1.msra.mxu0 0.0
    %233 = vmatprep.subr.mxu0 0.0
    %234 = vmatpush1.msra.mxu0 0.0
    %235 = vmatprep.subr.mxu0 0.0
    %236 = vmatpush1.msra.mxu0 0.0
    %237 = vmatprep.mubr.f32.mxu0 0.0
    %238 = vmatmul.mubr.f32.gmra.mrb[0].mxu0 %v171
    %v239 = vpop.f32.mrb[0].mxu0
    %v240 = vadd.f32 %v168, %v239
    %v241 = vpop.f32.mrb[0].mxu0
    %242 = vdwg.mxu0
    %v243 = vadd.f32 %v240, %v30
    %v244 = vmul.f32 %v243, %v55
    %246 = vrot.lane.b32.xlu0 %v244, 1
    %v247 = vpop.permute.xlu0 %246
    %v249 = vsel %vm62, 0.0, %v247
    %250 = vrot.lane.b32.xlu0 %v244, 127
    %v251 = vpop.permute.xlu0 %250
    %v253 = vsel %vm67, %v251, 0.0
    %254 = vrot.lane.b32.xlu0 %v244, 126
    %v255 = vpop.permute.xlu0 %254
    %vm257 = vcmask 539648
    %v258 = vsel %vm257, %v255, 0.0
    %v259 = vld [vmem:[%s5] sm:$0xff]
    %v260 = vld [vmem:[%s5 + $0x8] sm:$0xff]
    %vm261 = vcmask 261120
    %v263 = vsel %vm261, %v259, 0
    %v266 = vsel %vm261, %v260, 0
    %268 = vmatprep.subr.mxu0 0.0
    %269 = vmatpush1.msra.mxu0 %v249
    %270 = vmatprep.subr.mxu0 0.0
    %271 = vmatpush1.msra.mxu0 %v244
    %272 = vmatprep.subr.mxu0 0.0
    %273 = vmatpush1.msra.mxu0 %v253
    %274 = vmatprep.subr.mxu0 0.0
    %275 = vmatpush1.msra.mxu0 %v258
    %276 = vmatprep.subr.mxu0 0.0
    %277 = vmatpush1.msra.mxu0 0.0
    %278 = vmatprep.subr.mxu0 0.0
    %279 = vmatpush1.msra.mxu0 0.0
    %280 = vmatprep.subr.mxu0 0.0
    %281 = vmatpush1.msra.mxu0 0.0
    %282 = vmatprep.subr.mxu0 0.0
    %283 = vmatpush1.msra.mxu0 0.0
    %284 = vmatprep.subr.mxu0 0.0
    %285 = vmatpush1.msra.mxu0 0.0
    %286 = vmatprep.subr.mxu0 0.0
    %287 = vmatpush1.msra.mxu0 0.0
    %288 = vmatprep.subr.mxu0 0.0
    %289 = vmatpush1.msra.mxu0 0.0
    %290 = vmatprep.subr.mxu0 0.0
    %291 = vmatpush1.msra.mxu0 0.0
    %292 = vmatprep.subr.mxu0 0.0
    %293 = vmatpush1.msra.mxu0 0.0
    %294 = vmatprep.subr.mxu0 0.0
    %295 = vmatpush1.msra.mxu0 0.0
    %296 = vmatprep.subr.mxu0 0.0
    %297 = vmatpush1.msra.mxu0 0.0
    %298 = vmatprep.subr.mxu0 0.0
    %299 = vmatpush1.msra.mxu0 0.0
    %300 = vmatprep.subr.mxu0 0.0
    %301 = vmatpush1.msra.mxu0 0.0
    %302 = vmatprep.subr.mxu0 0.0
    %303 = vmatpush1.msra.mxu0 0.0
    %304 = vmatprep.subr.mxu0 0.0
    %305 = vmatpush1.msra.mxu0 0.0
    %306 = vmatprep.subr.mxu0 0.0
    %307 = vmatpush1.msra.mxu0 0.0
    %308 = vmatprep.subr.mxu0 0.0
    %309 = vmatpush1.msra.mxu0 0.0
    %310 = vmatprep.subr.mxu0 0.0
    %311 = vmatpush1.msra.mxu0 0.0
    %312 = vmatprep.subr.mxu0 0.0
    %313 = vmatpush1.msra.mxu0 0.0
    %314 = vmatprep.subr.mxu0 0.0
    %315 = vmatpush1.msra.mxu0 0.0
    %316 = vmatprep.subr.mxu0 0.0
    %317 = vmatpush1.msra.mxu0 0.0
    %318 = vmatprep.subr.mxu0 0.0
    %319 = vmatpush1.msra.mxu0 0.0
    %320 = vmatprep.subr.mxu0 0.0
    %321 = vmatpush1.msra.mxu0 0.0
    %322 = vmatprep.subr.mxu0 0.0
    %323 = vmatpush1.msra.mxu0 0.0
    %324 = vmatprep.subr.mxu0 0.0
    %325 = vmatpush1.msra.mxu0 0.0
    %326 = vmatprep.subr.mxu0 0.0
    %327 = vmatpush1.msra.mxu0 0.0
    %328 = vmatprep.subr.mxu0 0.0
    %329 = vmatpush1.msra.mxu0 0.0
    %330 = vmatprep.subr.mxu0 0.0
    %331 = vmatpush1.msra.mxu0 0.0
    %332 = vmatprep.mubr.f32.mxu0 0.0
    %333 = vmatmul.mubr.f32.gmra.mrb[0].mxu0 %v263
    %v334 = vpop.f32.mrb[0].mxu0
    %v335 = vadd.f32 0.0, %v334
    %v336 = vpop.f32.mrb[0].mxu0
    %337 = vmatprep.mubr.f32.mxu0 0.0
    %338 = vmatmul.mubr.f32.gmra.mrb[0].mxu0 %v266
    %v339 = vpop.f32.mrb[0].mxu0
    %v340 = vadd.f32 0.0, %v339
    %v341 = vpop.f32.mrb[0].mxu0
    %342 = vdwg.mxu0
    %v343 = vld [vmem:[%s7] sm:$0xff]
    %v344 = vld [vmem:[%s7 + $0x8] sm:$0xff]
    %v345 = vld [vmem:[%s7 + $0x10] sm:$0xff]
    %v346 = vld [vmem:[%s7 + $0x18] sm:$0xff]
    %v347 = vld [vmem:[%s7 + $0x20] sm:$0xff]
    %v348 = vld [vmem:[%s7 + $0x28] sm:$0xff]
    %v349 = vld [vmem:[%s7 + $0x30] sm:$0xff]
    %v350 = vld [vmem:[%s7 + $0x38] sm:$0xff]
    %v351 = vld [vmem:[%s7 + $0x40] sm:$0xf]
    %v352 = vld [vmem:[%s6] sm:$0xff]
    %v353 = vld [vmem:[%s6 + $0x8] sm:$0xff]
    %355 = vset.pattern.permute.xlu0 0
    %356 = vperm.xlu0 %355, %v352
    %v357 = vpop.permute.xlu0 %356
    %360 = vset.pattern.permute.xlu0 0
    %361 = vperm.xlu0 %360, %v353
    %v362 = vpop.permute.xlu0 %361
    %vm364 = vcmask 556032
    %v366 = vsel %vm364, %v335, 0
    %v369 = vsel %vm364, %v340, 0
    %vm371 = vcmask 1043456
    %v373 = vsel %vm371, %v351, 0
    %375 = vmatprep.subr.mxu0 0.0
    %376 = vmatpush1.msra.mxu0 %v343
    %377 = vmatprep.subr.mxu0 0.0
    %378 = vmatpush1.msra.mxu0 %v344
    %379 = vmatprep.subr.mxu0 0.0
    %380 = vmatpush1.msra.mxu0 %v345
    %381 = vmatprep.subr.mxu0 0.0
    %382 = vmatpush1.msra.mxu0 %v346
    %383 = vmatprep.subr.mxu0 0.0
    %384 = vmatpush1.msra.mxu0 %v347
    %385 = vmatprep.subr.mxu0 0.0
    %386 = vmatpush1.msra.mxu0 %v348
    %387 = vmatprep.subr.mxu0 0.0
    %388 = vmatpush1.msra.mxu0 %v349
    %389 = vmatprep.subr.mxu0 0.0
    %390 = vmatpush1.msra.mxu0 %v350
    %391 = vmatprep.subr.mxu0 0.0
    %392 = vmatpush1.msra.mxu0 %v373
    %393 = vmatprep.subr.mxu0 0.0
    %394 = vmatpush1.msra.mxu0 0.0
    %395 = vmatprep.subr.mxu0 0.0
    %396 = vmatpush1.msra.mxu0 0.0
    %397 = vmatprep.subr.mxu0 0.0
    %398 = vmatpush1.msra.mxu0 0.0
    %399 = vmatprep.subr.mxu0 0.0
    %400 = vmatpush1.msra.mxu0 0.0
    %401 = vmatprep.subr.mxu0 0.0
    %402 = vmatpush1.msra.mxu0 0.0
    %403 = vmatprep.subr.mxu0 0.0
    %404 = vmatpush1.msra.mxu0 0.0
    %405 = vmatprep.subr.mxu0 0.0
    %406 = vmatpush1.msra.mxu0 0.0
    %407 = vmatprep.subr.mxu0 0.0
    %408 = vmatpush1.msra.mxu0 0.0
    %409 = vmatprep.subr.mxu0 0.0
    %410 = vmatpush1.msra.mxu0 0.0
    %411 = vmatprep.subr.mxu0 0.0
    %412 = vmatpush1.msra.mxu0 0.0
    %413 = vmatprep.subr.mxu0 0.0
    %414 = vmatpush1.msra.mxu0 0.0
    %415 = vmatprep.subr.mxu0 0.0
    %416 = vmatpush1.msra.mxu0 0.0
    %417 = vmatprep.subr.mxu0 0.0
    %418 = vmatpush1.msra.mxu0 0.0
    %419 = vmatprep.subr.mxu0 0.0
    %420 = vmatpush1.msra.mxu0 0.0
    %421 = vmatprep.subr.mxu0 0.0
    %422 = vmatpush1.msra.mxu0 0.0
    %423 = vmatprep.subr.mxu0 0.0
    %424 = vmatpush1.msra.mxu0 0.0
    %425 = vmatprep.subr.mxu0 0.0
    %426 = vmatpush1.msra.mxu0 0.0
    %427 = vmatprep.subr.mxu0 0.0
    %428 = vmatpush1.msra.mxu0 0.0
    %429 = vmatprep.subr.mxu0 0.0
    %430 = vmatpush1.msra.mxu0 0.0
    %431 = vmatprep.subr.mxu0 0.0
    %432 = vmatpush1.msra.mxu0 0.0
    %433 = vmatprep.subr.mxu0 0.0
    %434 = vmatpush1.msra.mxu0 0.0
    %435 = vmatprep.subr.mxu0 0.0
    %436 = vmatpush1.msra.mxu0 0.0
    %437 = vmatprep.subr.mxu0 0.0
    %438 = vmatpush1.msra.mxu0 0.0
    %439 = vmatprep.mubr.f32.mxu0 0.0
    %440 = vmatmul.mubr.f32.gmra.mrb[0].mxu0 %v366
    %v441 = vpop.f32.mrb[0].mxu0
    %v442 = vadd.f32 %v357, %v441
    %v443 = vpop.f32.mrb[0].mxu0
    %444 = vmatprep.mubr.f32.mxu0 0.0
    %445 = vmatmul.mubr.f32.gmra.mrb[0].mxu0 %v369
    %v446 = vpop.f32.mrb[0].mxu0
    %v447 = vadd.f32 %v362, %v446
    %v448 = vpop.f32.mrb[0].mxu0
    %449 = vdwg.mxu0
    %450 = vst.msk [vmem:[#allocation2] sm:$0xff] %vm261, %v442
    %451 = vst.msk [vmem:[#allocation2 + $0x8] sm:$0xff] %vm261, %v447
    // Predicated region
    $region34: #{tpu_custom_call.1} parent=1 // pred_check
      _
    $region35: #{tpu_custom_call.1} parent=1 // pred_check_branch
      %453 = sbr.rel (0) target = $region37
    $region36: #{tpu_custom_call.1} parent=1 // pred_region
      %s455 = ssub.s32 256, 256
      %456 = vsyncadd [#allocation3], %s455
      %s457 = sshll.u32 [#allocation2], 4
      %s458 = int_to_ptr.vmem [resolvable:$true] %s457
      %463 = dma.vmem_to_hbm [thread:$0]  %s458, 256, %s8, [#allocation3], 128, 128, 8
    $region37: #{tpu_custom_call.1} parent=1 // pred_fallthru
      _
    // Predicated region
    $region38: #{tpu_custom_call.1} parent=1 // pred_check
      _
    $region39: #{tpu_custom_call.1} parent=1 // pred_check_branch
      %465 = sbr.rel (0) target = $region41
    $region40: #{tpu_custom_call.1} parent=1 // pred_region
      %466 = dma.done [#allocation3], 256
    $region41: #{tpu_custom_call.1} parent=1 // pred_fallthru
      _
    %467 = vsyncpa [#allocation3], 1

</llo_original>
